<compile_context>
chip_gen: v6e
topology: v6e:2x2x1
jax: 0.10.0
libtpu: 0.0.40
codegen_flags: <defaults>
</compile_context>

<pallas_src>
import functools

import jax
import jax.numpy as jnp
from jax.experimental import pallas as pl
from jax.experimental.pallas import tpu as pltpu


def _ntd_loss_kernel(logits_ref, dg_ref, tgt_ref, out_ref, *, tau, beta, batch):
    # Tiles are [C, TB]: classes on sublanes, batch on lanes.
    x = logits_ref[...].astype(jnp.float32)              # [C, TB]
    g = dg_ref[...].astype(jnp.float32)                  # [C, TB]
    tgt = tgt_ref[...]                                    # [1, TB] int32

    C, TB = x.shape
    cls = jax.lax.broadcasted_iota(jnp.int32, (C, TB), 0)
    is_true = cls == tgt                                   # [C, TB] bool

    # Padded batch columns (B rounded up to a whole tile) contribute 0.
    bpos = pl.program_id(0) * TB + jax.lax.broadcasted_iota(jnp.int32, (1, TB), 1)
    valid = (bpos < batch).astype(jnp.float32)             # [1, TB]

    # ------------- Cross-entropy per batch column (un-normalized) -----------
    m = jnp.max(x, axis=0, keepdims=True)                  # [1, TB]
    lse = m + jnp.log(jnp.sum(jnp.exp(x - m), axis=0, keepdims=True))
    true_logit = jnp.sum(jnp.where(is_true, x, 0.0), axis=0, keepdims=True)
    ce_col = lse - true_logit                              # [1, TB]

    # ------------- Not-true distillation KL (simplified algebra) ------------
    #   kl = sum_{not-true} q * (log q - log p)
    #      = (sum_c exp(t - tm) * (t - s)) / tsum  -  (tm + log tsum)  +  s_lse
    # (sum q = 1; exp(t-tm) is exactly 0 on the masked true row, so no extra
    #  selects are needed; t - s is computed from raw values -> no inf-inf.)
    neg_big = jnp.float32(-1e30)                           # keep the sentinel in f32
    inv_tau = jnp.float32(1.0 / tau)
    xs = x * inv_tau
    gs = g * inv_tau
    s = jnp.where(is_true, neg_big, xs)                    # student, true row masked
    t = jnp.where(is_true, neg_big, gs)                    # teacher, true row masked
    diff = gs - xs                                         # == t - s on not-true rows

    sm = jnp.max(s, axis=0, keepdims=True)
    s_lse = sm + jnp.log(jnp.sum(jnp.exp(s - sm), axis=0, keepdims=True))

    tm = jnp.max(t, axis=0, keepdims=True)
    t_exp = jnp.exp(t - tm)                                # 0 on the true row
    t_sum = jnp.sum(t_exp, axis=0, keepdims=True)          # >= 1
    t_dot = jnp.sum(t_exp * diff, axis=0, keepdims=True)

    # One per-column reciprocal instead of a per-element divide.
    kl_col = t_dot * pl.reciprocal(t_sum, approx=False) - (tm + jnp.log(t_sum)) + s_lse

    scale = jnp.float32(beta * tau * tau)
    partial = jnp.sum(valid * (ce_col + scale * kl_col), keepdims=True)   # (1, 1)

    # Lane-dense, unmasked (8,128) store of this tile's partial sum.
    out_ref[...] = jnp.broadcast_to(partial, (8, 128))


def ntd_loss(logits, dg_logits, targets, *, num_classes=10, tau=3.0, lamb=1.0):
    """Pallas implementation of NTD_Loss.forward(logits, targets, dg_logits)."""
    B, C = logits.shape
    assert C == num_classes

    # Batch tile (lane axis): multiple of 128, capped so 2 inputs x 2 buffers
    # of [C, TB] stay far below scoped VMEM on every generation (v5e/v6e/v7x).
    itemsize = jnp.dtype(logits.dtype).itemsize
    c_sub = ((C + 7) // 8) * 8
    budget = 8 * 1024 * 1024                                # working-set budget
    max_tb = max(128, (budget // (4 * c_sub * itemsize)) // 128 * 128)
    tb = int(min(512, max_tb, pl.cdiv(B, 128) * 128))
    num_tiles = int(pl.cdiv(B, tb))
    b_pad = num_tiles * tb

    # Transpose so batch sits on the lane axis (lane-dense for small C) and
    # pad batch up to a whole number of tiles.  Native dtype is passed through
    # (bf16 halves HBM->VMEM traffic); upcast happens once per tile in-kernel.
    # NOTE: for large C (>= 128) a [B, C] layout with a class grid axis would
    # be preferable; this module's small-num_classes case is handled here.
    x_t = jnp.pad(logits, ((0, b_pad - B), (0, 0))).T       # [C, b_pad]
    g_t = jnp.pad(dg_logits, ((0, b_pad - B), (0, 0))).T    # [C, b_pad]
    tgt = jnp.pad(targets.astype(jnp.int32), (0, b_pad - B)).reshape(1, b_pad)

    kernel = functools.partial(_ntd_loss_kernel, tau=float(tau),
                               beta=float(lamb), batch=B)

    partials = pl.pallas_call(
        kernel,
        out_shape=jax.ShapeDtypeStruct((num_tiles * 8, 128), jnp.float32),
        grid=(num_tiles,),
        in_specs=[
            pl.BlockSpec((C, tb), lambda i: (0, i)),
            pl.BlockSpec((C, tb), lambda i: (0, i)),
            pl.BlockSpec((1, tb), lambda i: (0, i)),
        ],
        out_specs=pl.BlockSpec((8, 128), lambda i: (i, 0)),
        compiler_params=pltpu.CompilerParams(
            dimension_semantics=("parallel",),
            vmem_limit_bytes=32 * 1024 * 1024,
        ),
    )(x_t, g_t, tgt)

    # Each (8,128) output block is filled with its tile's partial sum.
    tile_sums = partials[::8, 0]
    return jnp.sum(tile_sums) / B


def ntd_loss_ref(logits, dg_logits, targets, *, num_classes=10, tau=3.0, lamb=1.0):
    """Pure-JAX reference (mirrors the PyTorch semantics, uses explicit gather)."""
    B, C = logits.shape
    logits = logits.astype(jnp.float32)
    dg_logits = dg_logits.astype(jnp.float32)
    # CE (mean)
    ce = jnp.mean(jax.nn.logsumexp(logits, axis=1)
                  - jnp.take_along_axis(logits, targets[:, None], axis=1)[:, 0])
    # refine_as_not_true via gather of not-true positions
    pos = jnp.tile(jnp.arange(C)[None, :], (B, 1))
    keep = pos != targets[:, None]
    nt_pos = pos[keep].reshape(B, C - 1)
    s = jnp.take_along_axis(logits, nt_pos, axis=1) / tau
    t = jnp.take_along_axis(dg_logits, nt_pos, axis=1) / tau
    logp = jax.nn.log_softmax(s, axis=1)
    q = jax.nn.softmax(t, axis=1)
    kl = jnp.sum(q * (jnp.log(q) - logp)) / B
    return ce + lamb * (tau ** 2) * kl


if __name__ == "__main__":
    B, C = 8, 10
    key = jax.random.PRNGKey(0)
    k1, k2, k3 = jax.random.split(key, 3)
    logits = jax.random.normal(k1, (B, C), dtype=jnp.float32)
    dg_logits = jax.random.normal(k2, (B, C), dtype=jnp.float32)
    targets = jax.random.randint(k3, (B,), 0, C, dtype=jnp.int32)

    loss = ntd_loss(logits, dg_logits, targets, num_classes=C, tau=3.0, lamb=1.0)
    jax.block_until_ready(loss)

    ref = ntd_loss_ref(logits, dg_logits, targets, num_classes=C, tau=3.0, lamb=1.0)
    assert jnp.allclose(loss, ref, rtol=1e-4, atol=1e-5), (loss, ref)

    print("KERNEL_OK")
</pallas_src>

<mosaic_0001>
module attributes {stable_mosaic.version = 11 : i64} {
  func.func @_ntd_loss_kernel(%arg0: i32, %arg1: memref<10x128xf32, #tpu.memory_space<vmem>>, %arg2: memref<10x128xf32, #tpu.memory_space<vmem>>, %arg3: memref<1x128xi32, #tpu.memory_space<vmem>>, %arg4: memref<8x128xf32, #tpu.memory_space<vmem>>) attributes {dimension_semantics = [#tpu.dimension_semantics<parallel>], iteration_bounds = array<i64: 1>, scalar_prefetch = 0 : i64, scratch_operands = 0 : i64, tpu.core_type = #tpu.core_type<tc>, window_params = [{transform_indices = @transform_0, window_bounds = array<i64: 10, 128>}, {transform_indices = @transform_1, window_bounds = array<i64: 10, 128>}, {transform_indices = @transform_2, window_bounds = array<i64: 1, 128>}, {transform_indices = @transform_3, window_bounds = array<i64: 8, 128>}]} {
    %c0 = arith.constant 0 : index
    %c0_0 = arith.constant 0 : index
    %0 = vector.load %arg1[%c0, %c0_0] : memref<10x128xf32, #tpu.memory_space<vmem>>, vector<10x128xf32>
    %c0_1 = arith.constant 0 : index
    %c0_2 = arith.constant 0 : index
    %1 = vector.load %arg2[%c0_1, %c0_2] : memref<10x128xf32, #tpu.memory_space<vmem>>, vector<10x128xf32>
    %c0_3 = arith.constant 0 : index
    %c0_4 = arith.constant 0 : index
    %2 = vector.load %arg3[%c0_3, %c0_4] : memref<1x128xi32, #tpu.memory_space<vmem>>, vector<1x128xi32>
    %3 = tpu.iota {dimensions = array<i32: 0>} : vector<10x128xi32>
    %4 = vector.broadcast %2 : vector<1x128xi32> to vector<10x128xi32>
    %5 = arith.cmpi eq, %3, %4 : vector<10x128xi32>
    %c128_i32 = arith.constant 128 : i32
    %6 = arith.muli %arg0, %c128_i32 : i32
    %7 = tpu.iota {dimensions = array<i32: 1>} : vector<1x128xi32>
    %8 = vector.broadcast %6 : i32 to vector<1x128xi32>
    %9 = arith.addi %8, %7 : vector<1x128xi32>
    %c8_i32 = arith.constant 8 : i32
    %10 = vector.broadcast %c8_i32 : i32 to vector<1x128xi32>
    %11 = arith.cmpi slt, %9, %10 : vector<1x128xi32>
    %12 = arith.extui %11 : vector<1x128xi1> to vector<1x128xi32>
    %13 = arith.sitofp %12 : vector<1x128xi32> to vector<1x128xf32>
    %cst = arith.constant dense<0xFF800000> : vector<128xf32>
    %14 = vector.multi_reduction <maximumf>, %0, %cst [0] : vector<10x128xf32> to vector<128xf32>
    %15 = vector.shape_cast %14 : vector<128xf32> to vector<1x128xf32>
    %16 = vector.broadcast %15 : vector<1x128xf32> to vector<10x128xf32>
    %17 = arith.subf %0, %16 : vector<10x128xf32>
    %18 = math.exp %17 : vector<10x128xf32>
    %cst_5 = arith.constant dense<0.000000e+00> : vector<128xf32>
    %19 = vector.multi_reduction <add>, %18, %cst_5 [0] : vector<10x128xf32> to vector<128xf32>
    %20 = vector.shape_cast %19 : vector<128xf32> to vector<1x128xf32>
    %21 = math.log %20 : vector<1x128xf32>
    %22 = arith.addf %15, %21 : vector<1x128xf32>
    %cst_6 = arith.constant 0.000000e+00 : f32
    %23 = vector.broadcast %cst_6 : f32 to vector<10x128xf32>
    %24 = arith.select %5, %0, %23 : vector<10x128xi1>, vector<10x128xf32>
    %cst_7 = arith.constant dense<0.000000e+00> : vector<128xf32>
    %25 = vector.multi_reduction <add>, %24, %cst_7 [0] : vector<10x128xf32> to vector<128xf32>
    %26 = vector.shape_cast %25 : vector<128xf32> to vector<1x128xf32>
    %27 = arith.subf %22, %26 : vector<1x128xf32>
    %cst_8 = arith.constant 0.333333343 : f32
    %28 = vector.broadcast %cst_8 : f32 to vector<10x128xf32>
    %29 = arith.mulf %0, %28 : vector<10x128xf32>
    %cst_9 = arith.constant 0.333333343 : f32
    %30 = vector.broadcast %cst_9 : f32 to vector<10x128xf32>
    %31 = arith.mulf %1, %30 : vector<10x128xf32>
    %cst_10 = arith.constant -1.000000e+30 : f32
    %32 = vector.broadcast %cst_10 : f32 to vector<10x128xf32>
    %33 = arith.select %5, %32, %29 : vector<10x128xi1>, vector<10x128xf32>
    %cst_11 = arith.constant -1.000000e+30 : f32
    %34 = vector.broadcast %cst_11 : f32 to vector<10x128xf32>
    %35 = arith.select %5, %34, %31 : vector<10x128xi1>, vector<10x128xf32>
    %36 = arith.subf %31, %29 : vector<10x128xf32>
    %cst_12 = arith.constant dense<0xFF800000> : vector<128xf32>
    %37 = vector.multi_reduction <maximumf>, %33, %cst_12 [0] : vector<10x128xf32> to vector<128xf32>
    %38 = vector.shape_cast %37 : vector<128xf32> to vector<1x128xf32>
    %39 = vector.broadcast %38 : vector<1x128xf32> to vector<10x128xf32>
    %40 = arith.subf %33, %39 : vector<10x128xf32>
    %41 = math.exp %40 : vector<10x128xf32>
    %cst_13 = arith.constant dense<0.000000e+00> : vector<128xf32>
    %42 = vector.multi_reduction <add>, %41, %cst_13 [0] : vector<10x128xf32> to vector<128xf32>
    %43 = vector.shape_cast %42 : vector<128xf32> to vector<1x128xf32>
    %44 = math.log %43 : vector<1x128xf32>
    %45 = arith.addf %38, %44 : vector<1x128xf32>
    %cst_14 = arith.constant dense<0xFF800000> : vector<128xf32>
    %46 = vector.multi_reduction <maximumf>, %35, %cst_14 [0] : vector<10x128xf32> to vector<128xf32>
    %47 = vector.shape_cast %46 : vector<128xf32> to vector<1x128xf32>
    %48 = vector.broadcast %47 : vector<1x128xf32> to vector<10x128xf32>
    %49 = arith.subf %35, %48 : vector<10x128xf32>
    %50 = math.exp %49 : vector<10x128xf32>
    %cst_15 = arith.constant dense<0.000000e+00> : vector<128xf32>
    %51 = vector.multi_reduction <add>, %50, %cst_15 [0] : vector<10x128xf32> to vector<128xf32>
    %52 = vector.shape_cast %51 : vector<128xf32> to vector<1x128xf32>
    %53 = arith.mulf %50, %36 : vector<10x128xf32>
    %cst_16 = arith.constant dense<0.000000e+00> : vector<128xf32>
    %54 = vector.multi_reduction <add>, %53, %cst_16 [0] : vector<10x128xf32> to vector<128xf32>
    %55 = vector.shape_cast %54 : vector<128xf32> to vector<1x128xf32>
    %56 = tpu.reciprocal %52 : vector<1x128xf32> -> vector<1x128xf32>
    %57 = arith.mulf %55, %56 : vector<1x128xf32>
    %58 = math.log %52 : vector<1x128xf32>
    %59 = arith.addf %47, %58 : vector<1x128xf32>
    %60 = arith.subf %57, %59 : vector<1x128xf32>
    %61 = arith.addf %60, %45 : vector<1x128xf32>
    %cst_17 = arith.constant 9.000000e+00 : f32
    %62 = vector.broadcast %cst_17 : f32 to vector<1x128xf32>
    %63 = arith.mulf %62, %61 : vector<1x128xf32>
    %64 = arith.addf %27, %63 : vector<1x128xf32>
    %65 = arith.mulf %13, %64 : vector<1x128xf32>
    %66 = vector.shape_cast %65 : vector<1x128xf32> to vector<1x1x128xf32>
    %cst_18 = arith.constant dense<0.000000e+00> : vector<1xf32>
    %67 = vector.multi_reduction <add>, %66, %cst_18 [1, 2] : vector<1x1x128xf32> to vector<1xf32>
    %68 = vector.shape_cast %67 : vector<1xf32> to vector<1x1x1xf32>
    %69 = vector.extract %68[0, 0, 0] : f32 from vector<1x1x1xf32>
    %70 = vector.broadcast %69 : f32 to vector<1x1xf32>
    %71 = vector.shape_cast %70 : vector<1x1xf32> to vector<1x1xf32>
    %72 = vector.broadcast %71 : vector<1x1xf32> to vector<8x128xf32>
    %c0_19 = arith.constant 0 : index
    %c0_20 = arith.constant 0 : index
    %73 = vector.load %arg4[%c0_19, %c0_20] : memref<8x128xf32, #tpu.memory_space<vmem>>, vector<8x128xf32>
    tpu.vector_store %arg4[%c0_19, %c0_20], %72 {strides = array<i32>} : memref<8x128xf32, #tpu.memory_space<vmem>>, vector<8x128xf32>,
    return
  }
  func.func @transform_0(%arg0: i32) -> (i32, i32) {
    %c0_i32 = arith.constant 0 : i32
    %c0_i32_0 = arith.constant 0 : i32
    return %c0_i32, %arg0 : i32, i32
  }
  func.func @transform_1(%arg0: i32) -> (i32, i32) {
    %c0_i32 = arith.constant 0 : i32
    %c0_i32_0 = arith.constant 0 : i32
    return %c0_i32, %arg0 : i32, i32
  }
  func.func @transform_2(%arg0: i32) -> (i32, i32) {
    %c0_i32 = arith.constant 0 : i32
    %c0_i32_0 = arith.constant 0 : i32
    return %c0_i32, %arg0 : i32, i32
  }
  func.func @transform_3(%arg0: i32) -> (i32, i32) {
    %c0_i32 = arith.constant 0 : i32
    %c0_i32_0 = arith.constant 0 : i32
    return %arg0, %c0_i32 : i32, i32
  }
}

</mosaic_0001>

<llo_original>
// kernel: tpu_custom_call.1
$region0: #{tpu_custom_call.1}
  #allocation0 [shape = 'u32[]', space=smem, size = 0x4, offset = 0x4, fixed_abs, tag = 'smem constant byte address 0x4 - core index']
  #allocation1 [shape = 'u32[144,128]{1,0:T(1,128)}', space=vmem, size = 0x12000, scoped, tag = 'internal scratch']
  %s0 = inlined_call_operand.hbm [shape: f32[10,128], index: 0, kind: input, shape index: {}]
  %s1 = inlined_call_operand.hbm [shape: f32[10,128], index: 1, kind: input, shape index: {}]
  %s2 = inlined_call_operand.vmem [shape: s32[1,128], index: 2, kind: input, shape index: {}]
  %s3 = inlined_call_operand.hbm [shape: f32[8,128], index: 3, kind: output, shape index: {}]
  %s4 = sld [smem:[#allocation0]]
  $region30: #{tpu_custom_call.1} parent=0
    _
  %s6 = ssub.s32 1, %s4
  %s7 = scalar_select 0, %s6, %s4
  $region1: #{tpu_custom_call.1} parent=0
    #allocation2 [shape = 'u8[8192]{0}', space=vmem, size = 0x2000, scoped, tag = 'input window, operand 0, single buffered']
    #allocation3 [shape = 's32[1]{0}', space=sflag, size = 0x4, scoped, tag = 'scoped memory for tpu_custom_call.1']
    #allocation4 [shape = 's32[1]{0}', space=sflag, size = 0x4, scoped, tag = 'scoped memory for tpu_custom_call.1']
    #allocation5 [shape = 'u8[8192]{0}', space=vmem, size = 0x2000, scoped, tag = 'input window, operand 1, single buffered']
    #allocation6 [shape = 's32[1]{0}', space=sflag, size = 0x4, scoped, tag = 'scoped memory for tpu_custom_call.1']
    #allocation7 [shape = 'u8[4096]{0}', space=vmem, size = 0x1000, scoped, tag = 'output window, operand 0, single buffered']
    %8 = vsyncpa [#allocation3], 0
    %9 = vsyncpa [#allocation6], 0
    %10 = vsyncpa [#allocation4], 0
    // Predicated region
    $region2: #{tpu_custom_call.1} parent=1 // pred_check
      _
    $region3: #{tpu_custom_call.1} parent=1 // pred_check_branch
      %12 = sbr.rel (0) target = $region5
    $region4: #{tpu_custom_call.1} parent=1 // pred_region
      %s14 = ssub.s32 256, 256
      %15 = vsyncadd [#allocation3], %s14
      %s16 = sshll.u32 [#allocation2], 4
      %s17 = int_to_ptr.vmem [resolvable:$true] %s16
      %22 = dma.hbm_to_vmem [thread:$0]  %s0, 256, %s17, [#allocation3], 128, 128, 8
    $region5: #{tpu_custom_call.1} parent=1 // pred_fallthru
      _
    // Predicated region
    $region6: #{tpu_custom_call.1} parent=1 // pred_check
      _
    $region7: #{tpu_custom_call.1} parent=1 // pred_check_branch
      %24 = sbr.rel (0) target = $region9
    $region8: #{tpu_custom_call.1} parent=1 // pred_region
      %s26 = ssub.s32 256, 256
      %27 = vsyncadd [#allocation6], %s26
      %s28 = sshll.u32 [#allocation5], 4
      %s29 = int_to_ptr.vmem [resolvable:$true] %s28
      %34 = dma.hbm_to_vmem [thread:$0]  %s1, 256, %s29, [#allocation6], 128, 128, 8
    $region9: #{tpu_custom_call.1} parent=1 // pred_fallthru
      _
    // Predicated region
    $region10: #{tpu_custom_call.1} parent=1 // pred_check
      _
    $region11: #{tpu_custom_call.1} parent=1 // pred_check_branch
      %36 = sbr.rel (0) target = $region13
    $region12: #{tpu_custom_call.1} parent=1 // pred_region
      _
    $region13: #{tpu_custom_call.1} parent=1 // pred_fallthru
      _
    // Predicated region
    $region14: #{tpu_custom_call.1} parent=1 // pred_check
      _
    $region15: #{tpu_custom_call.1} parent=1 // pred_check_branch
      %38 = sbr.rel (0) target = $region17
    $region16: #{tpu_custom_call.1} parent=1 // pred_region
      %39 = dma.done [#allocation3], 256
    $region17: #{tpu_custom_call.1} parent=1 // pred_fallthru
      _
    // Predicated region
    $region18: #{tpu_custom_call.1} parent=1 // pred_check
      _
    $region19: #{tpu_custom_call.1} parent=1 // pred_check_branch
      %41 = sbr.rel (0) target = $region21
    $region20: #{tpu_custom_call.1} parent=1 // pred_region
      %42 = dma.done [#allocation6], 256
    $region21: #{tpu_custom_call.1} parent=1 // pred_fallthru
      _
    %v43 = vld [vmem:[#allocation2] sm:$0xff]
    %v44 = vld [vmem:[#allocation2 + $0x8] sm:$0x3]
    %v45 = vld [vmem:[#allocation5] sm:$0xff]
    %v46 = vld [vmem:[#allocation5 + $0x8] sm:$0x3]
    %v47 = vld [vmem:[%s2] sm:$0x1]
    %v48 = vlaneseq
    %v49 = vshrl.u32 %v48, 7
    %v50 = vadd.s32 %v49, 8
    %v51 = vlaneseq
    %v52 = vshrl.u32 %v51, 7
    %v53 = vsub.s32 0, %v52
    %v54 = vrot.slane %v47, %v53
    %vm55 = vcmp.eq.s32.totalorder %v49, %v54
    %vm56 = vcmp.eq.s32.totalorder %v50, %v54
    %s57 = smul.u32 0, 128
    %v58 = vlaneseq
    %v59 = vand.u32 %v58, 127
    %v60 = vstv %s57
    %v61 = vadd.s32 %v60, %v59
    %vm62 = vcmp.lt.s32.totalorder %v61, 8
    %v63 = vsel %vm62, 1, 0
    %v64 = vcvt.s32.f32 %v63
    %vm65 = vcmask 1041408
    %v66 = vsel %vm65, %v44, -inf
    %v67 = vmax.f32 %v43, %v66
    %v68 = vrot.slane %v67, 4
    %v69 = vmax.f32 %v67, %v68
    %v70 = vrot.slane %v69, 2
    %v71 = vmax.f32 %v69, %v70
    %v72 = vrot.slane %v71, 1
    %v73 = vmax.f32 %v71, %v72
    %v74 = vsub.f32 %v43, %v73
    %v75 = vsub.f32 %v44, %v73
    %v76 = vmul.f32 %v74, 1.442695
    %v77 = vpow.pop %v76
    %v78 = vmul.f32 %v75, 1.442695
    %v79 = vpow.pop %v78
    %v80 = vsel %vm65, %v79, 0.0
    %v81 = vadd.f32 %v77, %v80
    %v82 = vrot.slane %v81, 4
    %v83 = vadd.f32 %v81, %v82
    %v84 = vrot.slane %v83, 2
    %v85 = vadd.f32 %v83, %v84
    %v86 = vrot.slane %v85, 1
    %v87 = vadd.f32 %v85, %v86
    %v88 = vlog2.pop %v87
    %v89 = vmul.f32 %v88, 0.6931472
    %v90 = vadd.f32 %v73, %v89
    %v91 = vsel %vm55, %v43, 0.0
    %v92 = vsel %vm56, %v44, 0.0
    %v93 = vsel %vm65, %v92, 0.0
    %v94 = vadd.f32 %v91, %v93
    %v95 = vrot.slane %v94, 4
    %v96 = vadd.f32 %v94, %v95
    %v97 = vrot.slane %v96, 2
    %v98 = vadd.f32 %v96, %v97
    %v99 = vrot.slane %v98, 1
    %v100 = vadd.f32 %v98, %v99
    %v101 = vsub.f32 %v90, %v100
    %v102 = vmul.f32 %v43, 0.33333334
    %v103 = vmul.f32 %v44, 0.33333334
    %v104 = vmul.f32 %v45, 0.33333334
    %v105 = vmul.f32 %v46, 0.33333334
    %v106 = vsel %vm55, -1e+30, %v102
    %v107 = vsel %vm56, -1e+30, %v103
    %v108 = vsel %vm55, -1e+30, %v104
    %v109 = vsel %vm56, -1e+30, %v105
    %v110 = vsub.f32 %v104, %v102
    %v111 = vsub.f32 %v105, %v103
    %v112 = vsel %vm65, %v107, -inf
    %v113 = vmax.f32 %v106, %v112
    %v114 = vrot.slane %v113, 4
    %v115 = vmax.f32 %v113, %v114
    %v116 = vrot.slane %v115, 2
    %v117 = vmax.f32 %v115, %v116
    %v118 = vrot.slane %v117, 1
    %v119 = vmax.f32 %v117, %v118
    %v120 = vsub.f32 %v106, %v119
    %v121 = vsub.f32 %v107, %v119
    %v122 = vmul.f32 %v120, 1.442695
    %v123 = vpow.pop %v122
    %v124 = vmul.f32 %v121, 1.442695
    %v125 = vpow.pop %v124
    %v126 = vsel %vm65, %v125, 0.0
    %v127 = vadd.f32 %v123, %v126
    %v128 = vrot.slane %v127, 4
    %v129 = vadd.f32 %v127, %v128
    %v130 = vrot.slane %v129, 2
    %v131 = vadd.f32 %v129, %v130
    %v132 = vrot.slane %v131, 1
    %v133 = vadd.f32 %v131, %v132
    %v134 = vlog2.pop %v133
    %v135 = vmul.f32 %v134, 0.6931472
    %v136 = vadd.f32 %v119, %v135
    %v137 = vsel %vm65, %v109, -inf
    %v138 = vmax.f32 %v108, %v137
    %v139 = vrot.slane %v138, 4
    %v140 = vmax.f32 %v138, %v139
    %v141 = vrot.slane %v140, 2
    %v142 = vmax.f32 %v140, %v141
    %v143 = vrot.slane %v142, 1
    %v144 = vmax.f32 %v142, %v143
    %v145 = vsub.f32 %v108, %v144
    %v146 = vsub.f32 %v109, %v144
    %v147 = vmul.f32 %v145, 1.442695
    %v148 = vpow.pop %v147
    %v149 = vmul.f32 %v146, 1.442695
    %v150 = vpow.pop %v149
    %v151 = vsel %vm65, %v150, 0.0
    %v152 = vadd.f32 %v148, %v151
    %v153 = vrot.slane %v152, 4
    %v154 = vadd.f32 %v152, %v153
    %v155 = vrot.slane %v154, 2
    %v156 = vadd.f32 %v154, %v155
    %v157 = vrot.slane %v156, 1
    %v158 = vadd.f32 %v156, %v157
    %v159 = vmul.f32 %v148, %v110
    %v160 = vmul.f32 %v150, %v111
    %v161 = vsel %vm65, %v160, 0.0
    %v162 = vadd.f32 %v159, %v161
    %v163 = vrot.slane %v162, 4
    %v164 = vadd.f32 %v162, %v163
    %v165 = vrot.slane %v164, 2
    %v166 = vadd.f32 %v164, %v165
    %v167 = vrot.slane %v166, 1
    %v168 = vadd.f32 %v166, %v167
    %v169 = vrcp.pop %v158
    %v170 = vmul.f32 %v168, %v169
    %v171 = vlog2.pop %v158
    %v172 = vmul.f32 %v171, 0.6931472
    %v173 = vadd.f32 %v144, %v172
    %v174 = vsub.f32 %v170, %v173
    %v175 = vadd.f32 %v174, %v136
    %v176 = vmul.f32 %v175, 9.0
    %v177 = vadd.f32 %v101, %v176
    %v178 = vmul.f32 %v64, %v177
    %vm179 = vcmask 1040384
    %v180 = vsel %vm179, %v178, 0.0
    %181 = vadd.xlane.f32.xlu0 %v180
    %v182 = vpop.xlane.xlu0 %181
    %v183 = vrot.slane %v182, 4
    %v184 = vadd.f32 %v182, %v183
    %v185 = vrot.slane %v184, 2
    %v186 = vadd.f32 %v184, %v185
    %v187 = vrot.slane %v186, 1
    %v188 = vadd.f32 %v186, %v187
    %s189 = vtos %v188
    %v190 = vstv %s189
    %191 = vst [vmem:[#allocation7] sm:$0xff] %v190
    // Predicated region
    $region22: #{tpu_custom_call.1} parent=1 // pred_check
      _
    $region23: #{tpu_custom_call.1} parent=1 // pred_check_branch
      %193 = sbr.rel (0) target = $region25
    $region24: #{tpu_custom_call.1} parent=1 // pred_region
      %s195 = ssub.s32 128, 128
      %196 = vsyncadd [#allocation4], %s195
      %s198 = sshll.u32 [#allocation7], 4
      %s199 = int_to_ptr.vmem [resolvable:$true] %s198
      %201 = dma.vmem_to_hbm [thread:$0]  %s199, 128, %s3, [#allocation4]
    $region25: #{tpu_custom_call.1} parent=1 // pred_fallthru
      _
    // Predicated region
    $region26: #{tpu_custom_call.1} parent=1 // pred_check
      _
    $region27: #{tpu_custom_call.1} parent=1 // pred_check_branch
      %203 = sbr.rel (0) target = $region29
    $region28: #{tpu_custom_call.1} parent=1 // pred_region
      %204 = dma.done [#allocation4], 128
    $region29: #{tpu_custom_call.1} parent=1 // pred_fallthru
      _
    %205 = vsyncpa [#allocation3], 1
    %206 = vsyncpa [#allocation6], 1
    %207 = vsyncpa [#allocation4], 1

</llo_original>
